<compile_context>
chip_gen: v7x
topology: tpu7x:2x2x1
jax: 0.10.0
libtpu: 0.0.40
codegen_flags: <defaults>
</compile_context>

<pallas_src>
import functools

import jax
import jax.numpy as jnp
from jax.experimental import pallas as pl
from jax.experimental.pallas import tpu as pltpu

_LANE = 128
_MAX_TILE_ROWS = 2048                  # (2048, 128) f32 block = 1 MiB per input
_VMEM_LIMIT_BYTES = 32 * 1024 * 1024   # explicit scoped-VMEM limit (v5e default: 16 MiB)
_JNP_FALLBACK_ELEMS = 1024             # tiny inputs: plain jnp beats kernel-call overhead


def _round_up(x, m):
    return ((x + m - 1) // m) * m


def _log1p(x):
    """Accurate log1p from ops with guaranteed Mosaic lowerings (log/div/where).

    Kahan's correction: with u = fl(1 + x), log1p(x) = log(u) * x / (u - 1)
    when u != 1 (the x/(u-1) factor undoes the rounding of 1+x), and exactly x
    when u == 1 (|x| below f32 epsilon).  Matches jnp.log1p to ~1 ulp.
    """
    u = x + 1.0
    d = u - 1.0
    exact = d == 0.0
    safe_d = jnp.where(exact, 1.0, d)
    return jnp.where(exact, x, jnp.log(u) * (x / safe_d))


def _msle_tile_f32(pred_ref, tgt_ref):
    p = pred_ref[...].astype(jnp.float32)
    t = tgt_ref[...].astype(jnp.float32)
    d = _log1p(p) - _log1p(t)
    return d * d


def _msle_elem_kernel(pred_ref, tgt_ref, out_ref):
    out_ref[...] = _msle_tile_f32(pred_ref, tgt_ref).astype(out_ref.dtype)


def _msle_reduce_kernel(pred_ref, tgt_ref, out_ref, acc_ref, *,
                        rows, steps_per_chunk, needs_mask):
    # Grid = (chunk [parallel], step-within-chunk [arbitrary / reduction]).
    c = pl.program_id(0)
    k = pl.program_id(1)

    @pl.when(k == 0)
    def _():
        acc_ref[...] = jnp.zeros_like(acc_ref)

    sq = _msle_tile_f32(pred_ref, tgt_ref)               # (tile_rows, 128) f32
    if needs_mask:
        # Zero rows past the real slab: covers the ragged final block and the
        # fully-empty (clamped) steps of the over-covering last chunk.
        tile_rows = sq.shape[0]
        row0 = (c * steps_per_chunk + k) * tile_rows     # logical (unclamped) row
        rid = row0 + jax.lax.broadcasted_iota(jnp.int32, sq.shape, 0)
        sq = jnp.where(rid < rows, sq, 0.0)

    # Full-tile VPU accumulate; the single cross-sublane fold happens once per
    # chunk at the end.
    acc_ref[...] += sq

    @pl.when(k == pl.num_programs(1) - 1)
    def _():
        out_ref[...] = acc_ref[...].reshape(-1, 8, _LANE).sum(axis=0)


def _to_slab(x, rows, pad):
    flat = x.reshape(-1)
    if pad:  # at most 8*128 - 1 zeros; only materialized when actually needed
        flat = jnp.pad(flat, (0, pad))
    return flat.reshape(rows, _LANE)


def _msle_jnp(prediction, target, reduction, out_dtype):
    p = jnp.log1p(prediction.astype(jnp.float32))
    t = jnp.log1p(target.astype(jnp.float32))
    loss = jnp.square(p - t)
    if reduction == "none":
        return loss.astype(out_dtype)
    total = jnp.sum(loss) if reduction == "sum" else jnp.mean(loss)
    return total.astype(out_dtype)


def msle_loss(prediction, target, *, reduction="mean"):
    if reduction not in ("none", "mean", "sum"):
        raise ValueError(f"Incorrect reduction: {reduction}")
    prediction = jnp.asarray(prediction)
    target = jnp.asarray(target)
    assert prediction.shape == target.shape

    orig_shape = prediction.shape
    out_dtype = jnp.result_type(prediction.dtype, target.dtype)
    n = int(prediction.size)

    if n < _JNP_FALLBACK_ELEMS:
        return _msle_jnp(prediction, target, reduction, out_dtype)

    # Lane-dense (rows, 128) slab; rows is a multiple of 8 so every block and
    # the accumulator fold stay (8,128)-aligned.  Pad (zeros) is < 1024 elems.
    rows = _round_up(pl.cdiv(n, _LANE), 8)
    pad = rows * _LANE - n
    tile_rows = min(_MAX_TILE_ROWS, rows)
    total_steps = pl.cdiv(rows, tile_rows)
    in_block = (tile_rows, _LANE)

    p2d = _to_slab(prediction, rows, pad)
    t2d = _to_slab(target, rows, pad)

    if reduction == "none":
        out2d = pl.pallas_call(
            _msle_elem_kernel,
            out_shape=jax.ShapeDtypeStruct((rows, _LANE), out_dtype),
            grid_spec=pltpu.PrefetchScalarGridSpec(
                num_scalar_prefetch=0,
                grid=(total_steps,),
                in_specs=[pl.BlockSpec(in_block, lambda i: (i, 0)),
                          pl.BlockSpec(in_block, lambda i: (i, 0))],
                out_specs=pl.BlockSpec(in_block, lambda i: (i, 0)),
            ),
            compiler_params=pltpu.CompilerParams(
                dimension_semantics=("parallel",),
                vmem_limit_bytes=_VMEM_LIMIT_BYTES),
        )(p2d, t2d)
        out = out2d.reshape(-1)
        if pad:
            out = out[:n]
        return out.reshape(orig_shape)

    # sum / mean: two-level reduction.  Outer axis = independent chunks
    # ("parallel" -> both TCs on v7x, neutral on single-TC v5e/v6e); inner
    # axis = sequential accumulation into the VMEM scratch.  Always 2 chunks
    # when there is more than one step so v7x never runs single-core; the
    # cdiv split + clamped index_map + in-kernel mask handle uneven counts.
    num_chunks = 1 if total_steps == 1 else 2
    steps_per_chunk = pl.cdiv(total_steps, num_chunks)
    needs_mask = num_chunks * steps_per_chunk * tile_rows != rows

    def in_map(c, k, _spc=steps_per_chunk, _last=total_steps - 1):
        # Clamp so over-covering steps re-read the last valid block (their
        # contribution is masked to zero in the kernel) instead of issuing an
        # out-of-bounds DMA.
        return jnp.minimum(c * _spc + k, _last), 0

    kernel = functools.partial(
        _msle_reduce_kernel, rows=rows,
        steps_per_chunk=steps_per_chunk, needs_mask=needs_mask)

    partials = pl.pallas_call(
        kernel,
        out_shape=jax.ShapeDtypeStruct((num_chunks * 8, _LANE), jnp.float32),
        grid_spec=pltpu.PrefetchScalarGridSpec(
            num_scalar_prefetch=0,
            grid=(num_chunks, steps_per_chunk),
            in_specs=[pl.BlockSpec(in_block, in_map),
                      pl.BlockSpec(in_block, in_map)],
            out_specs=pl.BlockSpec((8, _LANE), lambda c, k: (c, 0)),
            scratch_shapes=[pltpu.VMEM(in_block, jnp.float32)],
        ),
        compiler_params=pltpu.CompilerParams(
            dimension_semantics=("parallel", "arbitrary"),
            vmem_limit_bytes=_VMEM_LIMIT_BYTES),
    )(p2d, t2d)

    # Zero padding / masked rows contribute exactly 0 to the sum; 'mean'
    # divides by the ORIGINAL element count.
    total = jnp.sum(partials, dtype=jnp.float32)
    if reduction == "mean":
        total = total / jnp.float32(n)
    return total.astype(out_dtype)


if __name__ == "__main__":
    key = jax.random.PRNGKey(0)
    shapes = [
        (2, 4, 16, 16),   # spec-style small NCHW input: single-step kernel path
        (7, 13, 49, 59),  # awkward size: multi-step grid, ragged masked tail, 2-chunk split
    ]
    ok = True
    for idx, shape in enumerate(shapes):
        kp, kt = jax.random.split(jax.random.fold_in(key, idx))
        # MSLE is defined for non-negative inputs.
        prediction = jax.random.uniform(kp, shape, dtype=jnp.float32, maxval=2.0)
        target = jax.random.uniform(kt, shape, dtype=jnp.float32, maxval=2.0)
        for reduction in ("mean", "sum", "none"):
            out = jax.block_until_ready(
                msle_loss(prediction, target, reduction=reduction))
            ref = _msle_jnp(prediction, target, reduction,
                            jnp.result_type(prediction, target))
            if not jnp.allclose(out, ref, rtol=1e-4, atol=1e-5):
                ok = False
                print(f"MISMATCH shape={shape} reduction={reduction}")
    if ok:
        print("KERNEL_OK")
</pallas_src>

<mosaic_0001>
module attributes {stable_mosaic.version = 11 : i64} {
  func.func @_msle_reduce_kernel(%arg0: i32, %arg1: i32, %arg2: memref<16x128xf32, #tpu.memory_space<vmem>>, %arg3: memref<16x128xf32, #tpu.memory_space<vmem>>, %arg4: memref<8x128xf32, #tpu.memory_space<vmem>>, %arg5: memref<16x128xf32, #tpu.memory_space<vmem>>) attributes {dimension_semantics = [#tpu.dimension_semantics<parallel>, #tpu.dimension_semantics<arbitrary>], iteration_bounds = array<i64: 1, 1>, scalar_prefetch = 0 : i64, scratch_operands = 1 : i64, tpu.core_type = #tpu.core_type<tc>, window_params = [{transform_indices = @transform_0, window_bounds = array<i64: 16, 128>}, {transform_indices = @transform_1, window_bounds = array<i64: 16, 128>}, {transform_indices = @transform_2, window_bounds = array<i64: 8, 128>}]} {
    %c0_i32 = arith.constant 0 : i32
    %0 = arith.cmpi eq, %arg1, %c0_i32 : i32
    %1 = arith.extui %0 : i1 to i32
    %c0_i32_0 = arith.constant 0 : i32
    %2 = arith.cmpi ne, %1, %c0_i32_0 : i32
    scf.if %2 {
      %cst_17 = arith.constant 0.000000e+00 : f32
      %37 = vector.broadcast %cst_17 : f32 to vector<16x128xf32>
      %c0_18 = arith.constant 0 : index
      %c0_19 = arith.constant 0 : index
      %38 = vector.load %arg5[%c0_18, %c0_19] : memref<16x128xf32, #tpu.memory_space<vmem>>, vector<16x128xf32>
      tpu.vector_store %arg5[%c0_18, %c0_19], %37 {strides = array<i32>} : memref<16x128xf32, #tpu.memory_space<vmem>>, vector<16x128xf32>,
    } else {
    }
    %c0 = arith.constant 0 : index
    %c0_1 = arith.constant 0 : index
    %3 = vector.load %arg2[%c0, %c0_1] : memref<16x128xf32, #tpu.memory_space<vmem>>, vector<16x128xf32>
    %c0_2 = arith.constant 0 : index
    %c0_3 = arith.constant 0 : index
    %4 = vector.load %arg3[%c0_2, %c0_3] : memref<16x128xf32, #tpu.memory_space<vmem>>, vector<16x128xf32>
    %cst = arith.constant 1.000000e+00 : f32
    %5 = vector.broadcast %cst : f32 to vector<16x128xf32>
    %6 = arith.addf %3, %5 : vector<16x128xf32>
    %cst_4 = arith.constant 1.000000e+00 : f32
    %7 = vector.broadcast %cst_4 : f32 to vector<16x128xf32>
    %8 = arith.subf %6, %7 : vector<16x128xf32>
    %cst_5 = arith.constant 0.000000e+00 : f32
    %9 = vector.broadcast %cst_5 : f32 to vector<16x128xf32>
    %10 = arith.cmpf oeq, %8, %9 : vector<16x128xf32>
    %cst_6 = arith.constant 1.000000e+00 : f32
    %11 = vector.broadcast %cst_6 : f32 to vector<16x128xf32>
    %12 = arith.select %10, %11, %8 : vector<16x128xi1>, vector<16x128xf32>
    %13 = math.log %6 : vector<16x128xf32>
    %14 = arith.divf %3, %12 : vector<16x128xf32>
    %15 = arith.mulf %13, %14 : vector<16x128xf32>
    %16 = arith.select %10, %3, %15 : vector<16x128xi1>, vector<16x128xf32>
    %cst_7 = arith.constant 1.000000e+00 : f32
    %17 = vector.broadcast %cst_7 : f32 to vector<16x128xf32>
    %18 = arith.addf %4, %17 : vector<16x128xf32>
    %cst_8 = arith.constant 1.000000e+00 : f32
    %19 = vector.broadcast %cst_8 : f32 to vector<16x128xf32>
    %20 = arith.subf %18, %19 : vector<16x128xf32>
    %cst_9 = arith.constant 0.000000e+00 : f32
    %21 = vector.broadcast %cst_9 : f32 to vector<16x128xf32>
    %22 = arith.cmpf oeq, %20, %21 : vector<16x128xf32>
    %cst_10 = arith.constant 1.000000e+00 : f32
    %23 = vector.broadcast %cst_10 : f32 to vector<16x128xf32>
    %24 = arith.select %22, %23, %20 : vector<16x128xi1>, vector<16x128xf32>
    %25 = math.log %18 : vector<16x128xf32>
    %26 = arith.divf %4, %24 : vector<16x128xf32>
    %27 = arith.mulf %25, %26 : vector<16x128xf32>
    %28 = arith.select %22, %4, %27 : vector<16x128xi1>, vector<16x128xf32>
    %29 = arith.subf %16, %28 : vector<16x128xf32>
    %30 = arith.mulf %29, %29 : vector<16x128xf32>
    %c0_11 = arith.constant 0 : index
    %c0_12 = arith.constant 0 : index
    %31 = vector.load %arg5[%c0_11, %c0_12] : memref<16x128xf32, #tpu.memory_space<vmem>>, vector<16x128xf32>
    %32 = arith.addf %31, %30 : vector<16x128xf32>
    %c0_13 = arith.constant 0 : index
    %c0_14 = arith.constant 0 : index
    %33 = vector.load %arg5[%c0_13, %c0_14] : memref<16x128xf32, #tpu.memory_space<vmem>>, vector<16x128xf32>
    tpu.vector_store %arg5[%c0_13, %c0_14], %32 {strides = array<i32>} : memref<16x128xf32, #tpu.memory_space<vmem>>, vector<16x128xf32>,
    %c0_i32_15 = arith.constant 0 : i32
    %34 = arith.cmpi eq, %arg1, %c0_i32_15 : i32
    %35 = arith.extui %34 : i1 to i32
    %c0_i32_16 = arith.constant 0 : i32
    %36 = arith.cmpi ne, %35, %c0_i32_16 : i32
    scf.if %36 {
      %c0_17 = arith.constant 0 : index
      %c0_18 = arith.constant 0 : index
      %37 = vector.load %arg5[%c0_17, %c0_18] : memref<16x128xf32, #tpu.memory_space<vmem>>, vector<16x128xf32>
      %38 = vector.shape_cast %37 : vector<16x128xf32> to vector<2x8x128xf32>
      %cst_19 = arith.constant dense<0.000000e+00> : vector<8x128xf32>
      %39 = vector.multi_reduction <add>, %38, %cst_19 [0] : vector<2x8x128xf32> to vector<8x128xf32>
      %c0_20 = arith.constant 0 : index
      %c0_21 = arith.constant 0 : index
      %40 = vector.load %arg4[%c0_20, %c0_21] : memref<8x128xf32, #tpu.memory_space<vmem>>, vector<8x128xf32>
      tpu.vector_store %arg4[%c0_20, %c0_21], %39 {strides = array<i32>} : memref<8x128xf32, #tpu.memory_space<vmem>>, vector<8x128xf32>,
    } else {
    }
    return
  }
  func.func @transform_0(%arg0: i32, %arg1: i32) -> (i32, i32) {
    %c1_i32 = arith.constant 1 : i32
    %0 = arith.muli %arg0, %c1_i32 : i32
    %1 = arith.addi %0, %arg1 : i32
    %c0_i32 = arith.constant 0 : i32
    %2 = arith.minsi %1, %c0_i32 : i32
    %c0_i32_0 = arith.constant 0 : i32
    %c0_i32_1 = arith.constant 0 : i32
    return %2, %c0_i32_0 : i32, i32
  }
  func.func @transform_1(%arg0: i32, %arg1: i32) -> (i32, i32) {
    %c1_i32 = arith.constant 1 : i32
    %0 = arith.muli %arg0, %c1_i32 : i32
    %1 = arith.addi %0, %arg1 : i32
    %c0_i32 = arith.constant 0 : i32
    %2 = arith.minsi %1, %c0_i32 : i32
    %c0_i32_0 = arith.constant 0 : i32
    %c0_i32_1 = arith.constant 0 : i32
    return %2, %c0_i32_0 : i32, i32
  }
  func.func @transform_2(%arg0: i32, %arg1: i32) -> (i32, i32) {
    %c0_i32 = arith.constant 0 : i32
    %c0_i32_0 = arith.constant 0 : i32
    return %arg0, %c0_i32 : i32, i32
  }
}

</mosaic_0001>

<llo_original>
// kernel: tpu_custom_call.1
$region0: #{tpu_custom_call.1}
  #allocation0 [shape = 'u32[]', space=smem, size = 0x4, offset = 0x4, fixed_abs, tag = 'smem constant byte address 0x4 - core index']
  #allocation1 [shape = 'u32[144,128]{1,0:T(1,128)}', space=vmem, size = 0x12000, scoped, tag = 'internal scratch']
  #allocation2 [shape = 'f32[16,128]{1,0:T(8,128)}', space=vmem, size = 0x2000, scoped, tag = 'scratch operand']
  %s0 = inlined_call_operand.hbm [shape: f32[16,128], index: 0, kind: input, shape index: {}]
  %s1 = inlined_call_operand.hbm [shape: f32[16,128], index: 1, kind: input, shape index: {}]
  %s2 = inlined_call_operand.hbm [shape: f32[8,128], index: 2, kind: output, shape index: {}]
  %s3 = sld [smem:[#allocation0]]
  $region34: #{tpu_custom_call.1} parent=0
    _
  %s5 = ssub.s32 1, %s3
  %s6 = scalar_select 0, %s5, %s3
  $region1: #{tpu_custom_call.1} parent=0
    #allocation3 [shape = 'u8[8192]{0}', space=vmem, size = 0x2000, scoped, tag = 'input window, operand 0, single buffered']
    #allocation4 [shape = 's32[1]{0}', space=sflag, size = 0x4, scoped, tag = 'scoped memory for tpu_custom_call.1']
    #allocation5 [shape = 's32[1]{0}', space=sflag, size = 0x4, scoped, tag = 'scoped memory for tpu_custom_call.1']
    #allocation6 [shape = 'u8[8192]{0}', space=vmem, size = 0x2000, scoped, tag = 'input window, operand 1, single buffered']
    #allocation7 [shape = 's32[1]{0}', space=sflag, size = 0x4, scoped, tag = 'scoped memory for tpu_custom_call.1']
    #allocation8 [shape = 'u8[4096]{0}', space=vmem, size = 0x1000, scoped, tag = 'output window, operand 0, single buffered']
    %7 = vsyncpa [#allocation4], 0
    %8 = vsyncpa [#allocation7], 0
    %9 = vsyncpa [#allocation5], 0
    // Predicated region
    $region2: #{tpu_custom_call.1} parent=1 // pred_check
      _
    $region3: #{tpu_custom_call.1} parent=1 // pred_check_branch
      %11 = sbr.rel (0) target = $region5
    $region4: #{tpu_custom_call.1} parent=1 // pred_region
      %s12 = sadd.s32 0, 0
      %p13 = scmp.lt.s32.totalorder %s12, 0
      %s14 = scalar_select %p13, %s12, 0
      %s15 = smul.u32 2, %s14
      %s17 = ssub.s32 256, 256
      %18 = vsyncadd [#allocation4], %s17
      %s19 = smul.addr %s15, 128
      %s20 = scalar_lea.hbm %s0, %s19
      %s21 = sshll.u32 [#allocation3], 4
      %s22 = int_to_ptr.vmem [resolvable:$true] %s21
      %27 = dma.hbm_to_vmem [thread:$0]  %s20, 256, %s22, [#allocation4], 128, 128, 8
    $region5: #{tpu_custom_call.1} parent=1 // pred_fallthru
      _
    // Predicated region
    $region6: #{tpu_custom_call.1} parent=1 // pred_check
      _
    $region7: #{tpu_custom_call.1} parent=1 // pred_check_branch
      %29 = sbr.rel (0) target = $region9
    $region8: #{tpu_custom_call.1} parent=1 // pred_region
      %s30 = sadd.s32 0, 0
      %p31 = scmp.lt.s32.totalorder %s30, 0
      %s32 = scalar_select %p31, %s30, 0
      %s33 = smul.u32 2, %s32
      %s35 = ssub.s32 256, 256
      %36 = vsyncadd [#allocation7], %s35
      %s37 = smul.addr %s33, 128
      %s38 = scalar_lea.hbm %s1, %s37
      %s39 = sshll.u32 [#allocation6], 4
      %s40 = int_to_ptr.vmem [resolvable:$true] %s39
      %45 = dma.hbm_to_vmem [thread:$0]  %s38, 256, %s40, [#allocation7], 128, 128, 8
    $region9: #{tpu_custom_call.1} parent=1 // pred_fallthru
      _
    // Predicated region
    $region10: #{tpu_custom_call.1} parent=1 // pred_check
      _
    $region11: #{tpu_custom_call.1} parent=1 // pred_check_branch
      %47 = sbr.rel (0) target = $region13
    $region12: #{tpu_custom_call.1} parent=1 // pred_region
      %48 = dma.done [#allocation4], 256
    $region13: #{tpu_custom_call.1} parent=1 // pred_fallthru
      _
    // Predicated region
    $region14: #{tpu_custom_call.1} parent=1 // pred_check
      _
    $region15: #{tpu_custom_call.1} parent=1 // pred_check_branch
      %50 = sbr.rel (0) target = $region17
    $region16: #{tpu_custom_call.1} parent=1 // pred_region
      %51 = dma.done [#allocation7], 256
    $region17: #{tpu_custom_call.1} parent=1 // pred_fallthru
      _
    %s52 = sadd.s32 0, 0
    %p53 = scmp.lt.s32.totalorder %s52, 0
    %s54 = scalar_select %p53, %s52, 0
    %s55 = smul.u32 2, %s54
    %s56 = sadd.s32 0, 0
    %p57 = scmp.lt.s32.totalorder %s56, 0
    %s58 = scalar_select %p57, %s56, 0
    %s59 = smul.u32 2, %s58
    %p60 = scmp.eq.s32.totalorder 0, 0
    // Predicated region
    $region18: #{tpu_custom_call.1} parent=1 // pred_check
      %p61 = pneg %p60
    $region19: #{tpu_custom_call.1} parent=1 // pred_check_branch
      %63 = sbr.rel (%p61) target = $region21
    $region20: #{tpu_custom_call.1} parent=1 // pred_region
      %64 = vst [vmem:[#allocation2] sm:$0xff] 0.0
      %65 = vst [vmem:[#allocation2 + $0x8] sm:$0xff] 0.0
    $region21: #{tpu_custom_call.1} parent=1 // pred_fallthru
      _
    %v66 = vld [vmem:[#allocation3] sm:$0xff]
    %v67 = vld [vmem:[#allocation3 + $0x8] sm:$0xff]
    %v68 = vld [vmem:[#allocation6] sm:$0xff]
    %v69 = vld [vmem:[#allocation6 + $0x8] sm:$0xff]
    %v70 = vadd.f32 %v66, 1.0
    %v71 = vadd.f32 %v67, 1.0
    %v72 = vsub.f32 %v70, 1.0
    %v73 = vsub.f32 %v71, 1.0
    %vm74 = vcmp.eq.f32.partialorder %v72, 0.0
    %vm75 = vcmp.eq.f32.partialorder %v73, 0.0
    %v76 = vsel %vm74, 1.0, %v72
    %v77 = vsel %vm75, 1.0, %v73
    %v78 = vlog2.pop %v70
    %v79 = vmul.f32 %v78, 0.6931472
    %v80 = vlog2.pop %v71
    %v81 = vmul.f32 %v80, 0.6931472
    %v82 = vrcp.pop %v76
    %v83 = vmul.f32 %v66, %v82
    %v84 = vrcp.pop %v77
    %v85 = vmul.f32 %v67, %v84
    %v86 = vmul.f32 %v79, %v83
    %v87 = vmul.f32 %v81, %v85
    %v88 = vsel %vm74, %v66, %v86
    %v89 = vsel %vm75, %v67, %v87
    %v90 = vadd.f32 %v68, 1.0
    %v91 = vadd.f32 %v69, 1.0
    %v92 = vsub.f32 %v90, 1.0
    %v93 = vsub.f32 %v91, 1.0
    %vm94 = vcmp.eq.f32.partialorder %v92, 0.0
    %vm95 = vcmp.eq.f32.partialorder %v93, 0.0
    %v96 = vsel %vm94, 1.0, %v92
    %v97 = vsel %vm95, 1.0, %v93
    %v98 = vlog2.pop %v90
    %v99 = vmul.f32 %v98, 0.6931472
    %v100 = vlog2.pop %v91
    %v101 = vmul.f32 %v100, 0.6931472
    %v102 = vrcp.pop %v96
    %v103 = vmul.f32 %v68, %v102
    %v104 = vrcp.pop %v97
    %v105 = vmul.f32 %v69, %v104
    %v106 = vmul.f32 %v99, %v103
    %v107 = vmul.f32 %v101, %v105
    %v108 = vsel %vm94, %v68, %v106
    %v109 = vsel %vm95, %v69, %v107
    %v110 = vsub.f32 %v88, %v108
    %v111 = vsub.f32 %v89, %v109
    %v112 = vmul.f32 %v110, %v110
    %v113 = vmul.f32 %v111, %v111
    %v114 = vld [vmem:[#allocation2] sm:$0xff]
    %v115 = vld [vmem:[#allocation2 + $0x8] sm:$0xff]
    %v116 = vadd.f32 %v114, %v112
    %v117 = vadd.f32 %v115, %v113
    %118 = vst [vmem:[#allocation2] sm:$0xff] %v116
    %119 = vst [vmem:[#allocation2 + $0x8] sm:$0xff] %v117
    // Predicated region
    $region22: #{tpu_custom_call.1} parent=1 // pred_check
      %p120 = pneg %p60
    $region23: #{tpu_custom_call.1} parent=1 // pred_check_branch
      %122 = sbr.rel (%p120) target = $region25
    $region24: #{tpu_custom_call.1} parent=1 // pred_region
      %v123 = vld [vmem:[#allocation2] sm:$0xff]
      %v124 = vld [vmem:[#allocation2 + $0x8] sm:$0xff]
      %v125 = vadd.f32 %v123, %v124
      %126 = vst [vmem:[#allocation8] sm:$0xff] %v125
    $region25: #{tpu_custom_call.1} parent=1 // pred_fallthru
      _
    // Predicated region
    $region26: #{tpu_custom_call.1} parent=1 // pred_check
      _
    $region27: #{tpu_custom_call.1} parent=1 // pred_check_branch
      %128 = sbr.rel (0) target = $region29
    $region28: #{tpu_custom_call.1} parent=1 // pred_region
      %s130 = ssub.s32 128, 128
      %131 = vsyncadd [#allocation5], %s130
      %s133 = sshll.u32 [#allocation8], 4
      %s134 = int_to_ptr.vmem [resolvable:$true] %s133
      %136 = dma.vmem_to_hbm [thread:$0]  %s134, 128, %s2, [#allocation5]
    $region29: #{tpu_custom_call.1} parent=1 // pred_fallthru
      _
    // Predicated region
    $region30: #{tpu_custom_call.1} parent=1 // pred_check
      _
    $region31: #{tpu_custom_call.1} parent=1 // pred_check_branch
      %138 = sbr.rel (0) target = $region33
    $region32: #{tpu_custom_call.1} parent=1 // pred_region
      %139 = dma.done [#allocation5], 128
    $region33: #{tpu_custom_call.1} parent=1 // pred_fallthru
      _
    %140 = vsyncpa [#allocation4], 1
    %141 = vsyncpa [#allocation7], 1
    %142 = vsyncpa [#allocation5], 1

</llo_original>
